<compile_context>
chip_gen: v7x
topology: tpu7x:2x2x1
jax: 0.10.0
libtpu: 0.0.40
codegen_flags: <defaults>
</compile_context>

<pallas_src>
import functools

import jax
import jax.numpy as jnp
from jax.experimental import pallas as pl
from jax.experimental.pallas import tpu as pltpu

LN_EPS = 1e-5  # nn.LayerNorm default


def _vmem_limit_bytes():
    cap = 64 * 1024 * 1024
    try:
        info = pltpu.get_tpu_info()
        cap = int(getattr(info, "vmem_capacity_bytes", cap))
    except Exception:
        pass
    # ~1/8 headroom; never request more than 112 MiB even on 128 MiB parts.
    return int(min(cap - cap // 8, 112 * 1024 * 1024))


_VMEM_LIMIT = _vmem_limit_bytes()


# ----------------------------------------------------------------------------
# Small math helpers (all f32 on the VPU; reciprocals go to the EUP).
# ----------------------------------------------------------------------------
def _erf(x):
    # Abramowitz & Stegun 7.1.26 — matches nn.GELU()'s exact (erf) GELU to ~1e-3.
    a1, a2, a3, a4, a5 = 0.254829592, -0.284496736, 1.421413741, -1.453152027, 1.061405429
    p = 0.3275911
    ax = jnp.abs(x)
    t = pl.reciprocal(1.0 + p * ax, approx=True)      # EUP slot, frees the VALU
    poly = ((((a5 * t + a4) * t + a3) * t + a2) * t + a1) * t
    y = 1.0 - poly * jnp.exp(-ax * ax)
    return jnp.where(x >= 0.0, y, -y)


def _gelu_exact(x):
    return 0.5 * x * (1.0 + _erf(x * 0.7071067811865476))


def _layernorm(x, gamma, beta):
    # x: (T, N) f32, gamma/beta: (1, N) f32
    mean = jnp.mean(x, axis=-1, keepdims=True)
    var = jnp.mean(jnp.square(x - mean), axis=-1, keepdims=True)
    return (x - mean) * jax.lax.rsqrt(var + LN_EPS) * gamma + beta


# ----------------------------------------------------------------------------
# Kernel 1: fused QKV projection (computed ONCE per (batch, seq tile)).
# q is pre-scaled by 1/sqrt(head_dim) here so attention never rescales.
# ----------------------------------------------------------------------------
def qkv_kernel(x_ref, wqkv_ref, bqkv_ref, q_ref, k_ref, v_ref, *, dim, scale):
    x = x_ref[0]                                                   # (tt, D) bf16
    qkv = jnp.dot(x, wqkv_ref[...],
                  preferred_element_type=jnp.float32) + bqkv_ref[...]   # (tt, 3D) f32
    q_ref[0] = (qkv[:, :dim] * scale).astype(q_ref.dtype)
    k_ref[0] = qkv[:, dim:2 * dim].astype(k_ref.dtype)
    v_ref[0] = qkv[:, 2 * dim:].astype(v_ref.dtype)


# ----------------------------------------------------------------------------
# Kernel 2: flash-style attention over KV tiles + out-proj + LN1 + MLP + LN2.
# Grid = (batch, query-tile, kv-tile); kv-tile is the "arbitrary" reduction axis.
# Scratch: running max m, running sum l (H, tq, 1) and accumulator (H, tq, dh).
# ----------------------------------------------------------------------------
def attn_mlp_kernel(x_ref, q_ref, k_ref, v_ref, wo_ref, bo_ref, g1_ref, be1_ref,
                    w1_ref, b1_ref, w2_ref, b2_ref, g2_ref, be2_ref,
                    o_ref, m_ref, l_ref, acc_ref, *, heads):
    kv_i = pl.program_id(2)

    @pl.when(kv_i == 0)
    def _():
        m_ref[...] = jnp.full_like(m_ref, -jnp.inf)
        l_ref[...] = jnp.zeros_like(l_ref)
        acc_ref[...] = jnp.zeros_like(acc_ref)

    tq, D = q_ref.shape[1], q_ref.shape[2]
    tkv = k_ref.shape[1]
    dh = D // heads

    # Single reshape + leading-batch transpose (no per-head slicing / stack).
    q3 = jnp.swapaxes(q_ref[0].reshape(tq, heads, dh), 0, 1)      # (H, tq, dh)  bf16
    k3 = jnp.swapaxes(k_ref[0].reshape(tkv, heads, dh), 0, 1)     # (H, tkv, dh) bf16
    v3 = jnp.swapaxes(v_ref[0].reshape(tkv, heads, dh), 0, 1)     # (H, tkv, dh) bf16

    # Head-batched scores for this KV tile (q already scaled).
    s = jnp.einsum('hqd,hkd->hqk', q3, k3,
                   preferred_element_type=jnp.float32)            # (H, tq, tkv) f32

    # Online softmax update.
    m_prev = m_ref[...]                                           # (H, tq, 1)
    m_new = jnp.maximum(m_prev, jnp.max(s, axis=-1, keepdims=True))
    alpha = jnp.exp(m_prev - m_new)
    p = jnp.exp(s - m_new)
    l_ref[...] = alpha * l_ref[...] + jnp.sum(p, axis=-1, keepdims=True)
    acc_ref[...] = alpha * acc_ref[...] + jnp.einsum(
        'hqk,hkd->hqd', p.astype(jnp.bfloat16), v3,
        preferred_element_type=jnp.float32)                       # (H, tq, dh) f32
    m_ref[...] = m_new

    @pl.when(kv_i == pl.num_programs(2) - 1)
    def _():
        # Normalize and merge heads lane-densely: (H,tq,dh) -> (tq, H*dh) = (tq, D).
        o3 = acc_ref[...] * pl.reciprocal(l_ref[...], approx=True)
        attn_in = jnp.swapaxes(o3, 0, 1).reshape(tq, D)           # (tq, D) f32

        attn = jnp.dot(attn_in.astype(jnp.bfloat16), wo_ref[...],
                       preferred_element_type=jnp.float32) + bo_ref[...]

        x = x_ref[0].astype(jnp.float32)                          # residual (f32 math)
        x1 = _layernorm(x + attn, g1_ref[...], be1_ref[...])

        h1 = jnp.dot(x1.astype(jnp.bfloat16), w1_ref[...],
                     preferred_element_type=jnp.float32) + b1_ref[...]
        h1 = _gelu_exact(h1)
        mlp = jnp.dot(h1.astype(jnp.bfloat16), w2_ref[...],
                      preferred_element_type=jnp.float32) + b2_ref[...]

        o_ref[0] = _layernorm(x1 + mlp, g2_ref[...], be2_ref[...]).astype(o_ref.dtype)


# ----------------------------------------------------------------------------
# Kernel 3: final LayerNorm (computed once per (b, seq tile), NOT per vocab tile).
# ----------------------------------------------------------------------------
def ln_kernel(x_ref, g_ref, b_ref, o_ref):
    x = x_ref[0].astype(jnp.float32)
    o_ref[0] = _layernorm(x, g_ref[...], b_ref[...]).astype(o_ref.dtype)


# ----------------------------------------------------------------------------
# Kernel 4: LM head, tiled over (batch, seq tile, 128-padded vocab tile).
# ----------------------------------------------------------------------------
def head_kernel(x_ref, wh_ref, bh_ref, o_ref):
    logits = jnp.dot(x_ref[0], wh_ref[...],
                     preferred_element_type=jnp.float32) + bh_ref[...]
    o_ref[0] = logits.astype(o_ref.dtype)


# ----------------------------------------------------------------------------
# Wrappers
# ----------------------------------------------------------------------------
def _const_spec(arr):
    """Spec for a grid-invariant operand (weights / biases / LN params).

    Constant-index blocks don't need double buffering; request a single VMEM
    buffer (halves resident weight VMEM on v7x).  Falls back to the default
    pipeline mode if pipeline_mode / Buffered is unavailable in this JAX.
    """
    zeros = (0,) * arr.ndim
    idx = lambda *_: zeros  # noqa: E731
    try:
        return pl.BlockSpec(arr.shape, idx, pipeline_mode=pl.Buffered(1))
    except Exception:
        return pl.BlockSpec(arr.shape, idx)


def _tile(n, candidates):
    for c in candidates:
        if n % c == 0:
            return c
    return n


def run_block(x, params, heads):
    """One GPTBlock: x (B, T, D) bf16 -> (B, T, D) bf16."""
    B, T, D = x.shape
    (wqkv, bqkv, wo, bo, g1, be1, w1, b1, w2, b2, g2, be2) = params
    dh = D // heads
    scale = 1.0 / float(dh) ** 0.5

    # --- QKV projection: one pass over the sequence (no per-query-tile redo). ---
    tt = _tile(T, (512, 256, 128, 64, 32, 16, 8))
    q, k, v = pl.pallas_call(
        functools.partial(qkv_kernel, dim=D, scale=scale),
        out_shape=tuple(jax.ShapeDtypeStruct((B, T, D), jnp.bfloat16) for _ in range(3)),
        grid=(B, T // tt),
        in_specs=[pl.BlockSpec((1, tt, D), lambda b, t: (b, t, 0)),
                  _const_spec(wqkv), _const_spec(bqkv)],
        out_specs=tuple(pl.BlockSpec((1, tt, D), lambda b, t: (b, t, 0)) for _ in range(3)),
        compiler_params=pltpu.CompilerParams(
            dimension_semantics=("parallel", "parallel"),
            vmem_limit_bytes=_VMEM_LIMIT),
    )(x, wqkv, bqkv)

    # --- flash-blocked attention + out-proj + LN1 + MLP + LN2 ---
    tq = _tile(T, (256, 128, 64, 32, 16, 8))        # keep >=2 grid points when possible
    tkv = _tile(T, (512, 256, 128, 64, 32, 16, 8))
    qspec = pl.BlockSpec((1, tq, D), lambda b, qi, ki: (b, qi, 0))
    kvspec = pl.BlockSpec((1, tkv, D), lambda b, qi, ki: (b, ki, 0))
    consts = (wo, bo, g1, be1, w1, b1, w2, b2, g2, be2)
    return pl.pallas_call(
        functools.partial(attn_mlp_kernel, heads=heads),
        out_shape=jax.ShapeDtypeStruct((B, T, D), jnp.bfloat16),
        grid=(B, T // tq, T // tkv),
        in_specs=[qspec, qspec, kvspec, kvspec] + [_const_spec(p) for p in consts],
        out_specs=pl.BlockSpec((1, tq, D), lambda b, qi, ki: (b, qi, 0)),
        scratch_shapes=[pltpu.VMEM((heads, tq, 1), jnp.float32),   # running max
                        pltpu.VMEM((heads, tq, 1), jnp.float32),   # running sum
                        pltpu.VMEM((heads, tq, dh), jnp.float32)], # accumulator
        compiler_params=pltpu.CompilerParams(
            dimension_semantics=("parallel", "parallel", "arbitrary"),
            vmem_limit_bytes=_VMEM_LIMIT),
    )(x, q, k, v, *consts)


def run_final_ln(x, gamma, beta):
    B, T, D = x.shape
    tt = _tile(T, (512, 256, 128, 64, 32, 16, 8))
    return pl.pallas_call(
        ln_kernel,
        out_shape=jax.ShapeDtypeStruct((B, T, D), jnp.bfloat16),
        grid=(B, T // tt),
        in_specs=[pl.BlockSpec((1, tt, D), lambda b, t: (b, t, 0)),
                  _const_spec(gamma), _const_spec(beta)],
        out_specs=pl.BlockSpec((1, tt, D), lambda b, t: (b, t, 0)),
        compiler_params=pltpu.CompilerParams(
            dimension_semantics=("parallel", "parallel"),
            vmem_limit_bytes=_VMEM_LIMIT),
    )(x, gamma, beta)


def run_head(x, wh, bh):
    B, T, D = x.shape
    vp = wh.shape[1]
    tt = _tile(T, (256, 128, 64, 32, 16, 8))
    tv = _tile(vp, (512, 256, 128))
    return pl.pallas_call(
        head_kernel,
        out_shape=jax.ShapeDtypeStruct((B, T, vp), jnp.bfloat16),
        grid=(B, T // tt, vp // tv),
        in_specs=[pl.BlockSpec((1, tt, D), lambda b, t, j: (b, t, 0)),
                  pl.BlockSpec((D, tv), lambda b, t, j: (0, j)),
                  pl.BlockSpec((1, tv), lambda b, t, j: (0, j))],
        out_specs=pl.BlockSpec((1, tt, tv), lambda b, t, j: (b, t, j)),
        compiler_params=pltpu.CompilerParams(
            dimension_semantics=("parallel", "parallel", "parallel"),
            vmem_limit_bytes=_VMEM_LIMIT),
    )(x, wh, bh)


# ----------------------------------------------------------------------------
# Deterministic synthetic parameters (no checkpoint load).
# Matmul weights bf16 (MXU operands, half the DMA bytes); biases / LN params f32.
# ----------------------------------------------------------------------------
def init_block_params(key, dim):
    ks = jax.random.split(key, 4)
    bf16, f32 = jnp.bfloat16, jnp.float32
    wqkv = (0.02 * jax.random.normal(ks[0], (dim, 3 * dim), f32)).astype(bf16)
    bqkv = jnp.zeros((1, 3 * dim), f32)
    wo = (0.02 * jax.random.normal(ks[1], (dim, dim), f32)).astype(bf16)
    bo = jnp.zeros((1, dim), f32)
    g1 = jnp.ones((1, dim), f32)
    be1 = jnp.zeros((1, dim), f32)
    w1 = (0.02 * jax.random.normal(ks[2], (dim, 4 * dim), f32)).astype(bf16)
    b1 = jnp.zeros((1, 4 * dim), f32)
    w2 = (0.02 * jax.random.normal(ks[3], (4 * dim, dim), f32)).astype(bf16)
    b2 = jnp.zeros((1, dim), f32)
    g2 = jnp.ones((1, dim), f32)
    be2 = jnp.zeros((1, dim), f32)
    return (wqkv, bqkv, wo, bo, g1, be1, w1, b1, w2, b2, g2, be2)


def init_head_params(key, dim, vocab):
    f32 = jnp.float32
    vpad = ((vocab + 127) // 128) * 128          # lane-pad vocab to 128
    gf = jnp.ones((1, dim), f32)
    bf = jnp.zeros((1, dim), f32)
    wh = jnp.zeros((dim, vpad), f32)
    wh = wh.at[:, :vocab].set(0.02 * jax.random.normal(key, (dim, vocab), f32))
    wh = wh.astype(jnp.bfloat16)
    bh = jnp.zeros((1, vpad), f32)
    return (gf, bf, wh, bh)


def gpt_forward(tokens, tok_emb, pos_emb, block_params, head_params, heads, vocab):
    B, T = tokens.shape
    # TODO(synk): token/positional embedding gather stays plain JAX (random-access
    # gather, not the compute hot path).  Residual stream carried in bf16.
    x = (jnp.take(tok_emb, tokens, axis=0) + pos_emb[:T][None, :, :]).astype(jnp.bfloat16)
    for lp in block_params:
        x = run_block(x, lp, heads)
    gf, bf, wh, bh = head_params
    x = run_final_ln(x, gf, bf)
    logits = run_head(x, wh, bh)
    if logits.shape[-1] != vocab:
        # vocab was lane-padded to a multiple of 128; downstream consumers should
        # mask the padded columns instead of paying for this extra HBM crop.
        logits = logits[..., :vocab]
    return logits


if __name__ == "__main__":
    vocab_size, dim, layers, heads = 128, 32, 2, 4
    B, T = 2, 8

    key = jax.random.PRNGKey(0)
    k_tok, k_temb, k_pemb, k_head, k_blocks = jax.random.split(key, 5)

    tokens = jax.random.randint(k_tok, (B, T), 0, vocab_size, dtype=jnp.int32)
    tok_emb = 0.02 * jax.random.normal(k_temb, (vocab_size, dim), jnp.float32)
    pos_emb = 0.02 * jax.random.normal(k_pemb, (512, dim), jnp.float32)

    block_keys = jax.random.split(k_blocks, layers)
    block_params = [init_block_params(bk, dim) for bk in block_keys]
    head_params = init_head_params(k_head, dim, vocab_size)

    logits = gpt_forward(tokens, tok_emb, pos_emb, block_params, head_params,
                         heads, vocab_size)
    logits = jax.block_until_ready(logits)

    assert logits.shape == (B, T, vocab_size), logits.shape
    assert bool(jnp.all(jnp.isfinite(logits.astype(jnp.float32))))
    print("KERNEL_OK")
</pallas_src>

<mosaic_0001>
module attributes {stable_mosaic.version = 11 : i64} {
  func.func @qkv_kernel(%arg0: i32, %arg1: i32, %arg2: memref<1x8x32xbf16, #tpu.memory_space<vmem>>, %arg3: memref<32x96xbf16, #tpu.memory_space<vmem>>, %arg4: memref<1x96xf32, #tpu.memory_space<vmem>>, %arg5: memref<1x8x32xbf16, #tpu.memory_space<vmem>>, %arg6: memref<1x8x32xbf16, #tpu.memory_space<vmem>>, %arg7: memref<1x8x32xbf16, #tpu.memory_space<vmem>>) attributes {dimension_semantics = [#tpu.dimension_semantics<parallel>, #tpu.dimension_semantics<parallel>], iteration_bounds = array<i64: 2, 1>, scalar_prefetch = 0 : i64, scratch_operands = 0 : i64, tpu.core_type = #tpu.core_type<tc>, window_params = [{transform_indices = @transform_0, window_bounds = array<i64: 1, 8, 32>}, {pipeline_mode = #tpu.pipeline_mode<synchronous>, transform_indices = @transform_1, window_bounds = array<i64: 32, 96>}, {pipeline_mode = #tpu.pipeline_mode<synchronous>, transform_indices = @transform_2, window_bounds = array<i64: 1, 96>}, {transform_indices = @transform_3, window_bounds = array<i64: 1, 8, 32>}, {transform_indices = @transform_4, window_bounds = array<i64: 1, 8, 32>}, {transform_indices = @transform_5, window_bounds = array<i64: 1, 8, 32>}]} {
    %c0 = arith.constant 0 : index
    %c0_0 = arith.constant 0 : index
    %c0_1 = arith.constant 0 : index
    %0 = vector.load %arg2[%c0, %c0_0, %c0_1] : memref<1x8x32xbf16, #tpu.memory_space<vmem>>, vector<1x8x32xbf16>
    %1 = vector.shape_cast %0 : vector<1x8x32xbf16> to vector<8x32xbf16>
    %c0_2 = arith.constant 0 : index
    %c0_3 = arith.constant 0 : index
    %2 = vector.load %arg3[%c0_2, %c0_3] : memref<32x96xbf16, #tpu.memory_space<vmem>>, vector<32x96xbf16>
    %cst = arith.constant dense<0.000000e+00> : vector<8x96xf32>
    %3 = tpu.matmul %1, %2, %cst {dimension_numbers = #tpu.dot_dimension_numbers<[1], [0], [0], [1], [0, 0, 1, 1], [], []>} : vector<8x32xbf16>, vector<32x96xbf16>, vector<8x96xf32> -> vector<8x96xf32>
    %c0_4 = arith.constant 0 : index
    %c0_5 = arith.constant 0 : index
    %4 = vector.load %arg4[%c0_4, %c0_5] : memref<1x96xf32, #tpu.memory_space<vmem>>, vector<1x96xf32>
    %5 = vector.broadcast %4 : vector<1x96xf32> to vector<8x96xf32>
    %6 = arith.addf %3, %5 : vector<8x96xf32>
    %7 = vector.extract_strided_slice %6 {offsets = [0, 0], sizes = [8, 32], strides = [1, 1]} : vector<8x96xf32> to vector<8x32xf32>
    %cst_6 = arith.constant 0.353553385 : f32
    %8 = vector.broadcast %cst_6 : f32 to vector<8x32xf32>
    %9 = arith.mulf %7, %8 : vector<8x32xf32>
    %10 = arith.truncf %9 : vector<8x32xf32> to vector<8x32xbf16>
    %c0_7 = arith.constant 0 : index
    %c0_8 = arith.constant 0 : index
    %c0_9 = arith.constant 0 : index
    %11 = vector.load %arg5[%c0_7, %c0_8, %c0_9] : memref<1x8x32xbf16, #tpu.memory_space<vmem>>, vector<1x8x32xbf16>
    %12 = vector.shape_cast %11 : vector<1x8x32xbf16> to vector<8x32xbf16>
    %13 = vector.shape_cast %10 : vector<8x32xbf16> to vector<1x8x32xbf16>
    tpu.vector_store %arg5[%c0_7, %c0_8, %c0_9], %13 {strides = array<i32>} : memref<1x8x32xbf16, #tpu.memory_space<vmem>>, vector<1x8x32xbf16>,
    %14 = vector.extract_strided_slice %6 {offsets = [0, 32], sizes = [8, 32], strides = [1, 1]} : vector<8x96xf32> to vector<8x32xf32>
    %15 = arith.truncf %14 : vector<8x32xf32> to vector<8x32xbf16>
    %c0_10 = arith.constant 0 : index
    %c0_11 = arith.constant 0 : index
    %c0_12 = arith.constant 0 : index
    %16 = vector.load %arg6[%c0_10, %c0_11, %c0_12] : memref<1x8x32xbf16, #tpu.memory_space<vmem>>, vector<1x8x32xbf16>
    %17 = vector.shape_cast %16 : vector<1x8x32xbf16> to vector<8x32xbf16>
    %18 = vector.shape_cast %15 : vector<8x32xbf16> to vector<1x8x32xbf16>
    tpu.vector_store %arg6[%c0_10, %c0_11, %c0_12], %18 {strides = array<i32>} : memref<1x8x32xbf16, #tpu.memory_space<vmem>>, vector<1x8x32xbf16>,
    %19 = vector.extract_strided_slice %6 {offsets = [0, 64], sizes = [8, 32], strides = [1, 1]} : vector<8x96xf32> to vector<8x32xf32>
    %20 = arith.truncf %19 : vector<8x32xf32> to vector<8x32xbf16>
    %c0_13 = arith.constant 0 : index
    %c0_14 = arith.constant 0 : index
    %c0_15 = arith.constant 0 : index
    %21 = vector.load %arg7[%c0_13, %c0_14, %c0_15] : memref<1x8x32xbf16, #tpu.memory_space<vmem>>, vector<1x8x32xbf16>
    %22 = vector.shape_cast %21 : vector<1x8x32xbf16> to vector<8x32xbf16>
    %23 = vector.shape_cast %20 : vector<8x32xbf16> to vector<1x8x32xbf16>
    tpu.vector_store %arg7[%c0_13, %c0_14, %c0_15], %23 {strides = array<i32>} : memref<1x8x32xbf16, #tpu.memory_space<vmem>>, vector<1x8x32xbf16>,
    return
  }
  func.func @transform_0(%arg0: i32, %arg1: i32) -> (i32, i32, i32) {
    %c0_i32 = arith.constant 0 : i32
    %c0_i32_0 = arith.constant 0 : i32
    return %arg0, %arg1, %c0_i32 : i32, i32, i32
  }
  func.func @transform_1(%arg0: i32, %arg1: i32) -> (i32, i32) {
    %c0_i32 = arith.constant 0 : i32
    %c0_i32_0 = arith.constant 0 : i32
    %c0_i32_1 = arith.constant 0 : i32
    return %c0_i32, %c0_i32_0 : i32, i32
  }
  func.func @transform_2(%arg0: i32, %arg1: i32) -> (i32, i32) {
    %c0_i32 = arith.constant 0 : i32
    %c0_i32_0 = arith.constant 0 : i32
    %c0_i32_1 = arith.constant 0 : i32
    return %c0_i32, %c0_i32_0 : i32, i32
  }
  func.func @transform_3(%arg0: i32, %arg1: i32) -> (i32, i32, i32) {
    %c0_i32 = arith.constant 0 : i32
    %c0_i32_0 = arith.constant 0 : i32
    return %arg0, %arg1, %c0_i32 : i32, i32, i32
  }
  func.func @transform_4(%arg0: i32, %arg1: i32) -> (i32, i32, i32) {
    %c0_i32 = arith.constant 0 : i32
    %c0_i32_0 = arith.constant 0 : i32
    return %arg0, %arg1, %c0_i32 : i32, i32, i32
  }
  func.func @transform_5(%arg0: i32, %arg1: i32) -> (i32, i32, i32) {
    %c0_i32 = arith.constant 0 : i32
    %c0_i32_0 = arith.constant 0 : i32
    return %arg0, %arg1, %c0_i32 : i32, i32, i32
  }
}

</mosaic_0001>

<llo_original>
// kernel: tpu_custom_call.1
$region0: #{tpu_custom_call.1}
  #allocation0 [shape = 'u32[]', space=smem, size = 0x4, offset = 0x4, fixed_abs, tag = 'smem constant byte address 0x4 - core index']
  #allocation1 [shape = 'u32[144,128]{1,0:T(1,128)}', space=vmem, size = 0x12000, scoped, tag = 'internal scratch']
  %s0 = inlined_call_operand.hbm [shape: bf16[2,8,32], index: 0, kind: input, shape index: {}]
  %s1 = inlined_call_operand.hbm [shape: bf16[32,96], index: 1, kind: input, shape index: {}]
  %s2 = inlined_call_operand.vmem [shape: f32[1,96], index: 2, kind: input, shape index: {}]
  %s3 = inlined_call_operand.hbm [shape: bf16[2,8,32], index: 3, kind: output, shape index: {0}]
  %s4 = inlined_call_operand.hbm [shape: bf16[2,8,32], index: 4, kind: output, shape index: {1}]
  %s5 = inlined_call_operand.hbm [shape: bf16[2,8,32], index: 5, kind: output, shape index: {2}]
  %6 = xla_tuple %s3, %s4, %s5
  %s7 = sld [smem:[#allocation0]]
  $region69: #{tpu_custom_call.1} parent=0
    _
  %s9 = ssub.s32 1, %s7
  %s10 = scalar_select 0, %s9, %s7
  $region1: #{tpu_custom_call.1} parent=0
    #allocation2 [shape = 'u8[4096]{0}', space=vmem, size = 0x1000, scoped, tag = 'input window, operand 0']
    #allocation3 [shape = 's32[2]{0}', space=sflag, size = 0x8, scoped, tag = 'scoped memory for tpu_custom_call.1']
    #allocation4 [shape = 's32[2]{0}', space=sflag, size = 0x8, scoped, tag = 'scoped memory for tpu_custom_call.1']
    #allocation5 [shape = 'u8[8192]{0}', space=vmem, size = 0x2000, scoped, tag = 'input window, operand 1, single buffered']
    #allocation6 [shape = 's32[1]{0}', space=sflag, size = 0x4, scoped, tag = 'scoped memory for tpu_custom_call.1']
    #allocation7 [shape = 'u8[4096]{0}', space=vmem, size = 0x1000, scoped, tag = 'output window, operand 0']
    #allocation8 [shape = 'u8[4096]{0}', space=vmem, size = 0x1000, scoped, tag = 'output window, operand 1']
    #allocation9 [shape = 's32[2]{0}', space=sflag, size = 0x8, scoped, tag = 'scoped memory for tpu_custom_call.1']
    #allocation10 [shape = 'u8[4096]{0}', space=vmem, size = 0x1000, scoped, tag = 'output window, operand 2']
    %11 = vsyncpa [#allocation3], 0
    %s12 = scalar_lea.sflag [#allocation3], 1
    %13 = vsyncpa %s12, 0
    %14 = vsyncpa [#allocation6], 0
    %15 = vsyncpa [#allocation4], 0
    %s16 = scalar_lea.sflag [#allocation4], 1
    %17 = vsyncpa %s16, 0
    %18 = vsyncpa [#allocation9], 0
    %s19 = scalar_lea.sflag [#allocation9], 1
    %20 = vsyncpa %s19, 0
    loop: start=0, step=1, limit=4
    $region2: #{tpu_custom_call.1} parent=1 // loop_pre_header
      _
    $region3: #{tpu_custom_call.1} parent=1 // loop_header
      %s22 = sphi 0, %s26
      %p23 = scmp.ge.s32.totalorder %s22, 4
      %s29 = sphi 0, %s41
      %s30 = sphi 0, %s37
      %s31 = sphi 0, %s29
      %s32 = sphi 0, %s30
      %s33 = sphi 0, %s31
      %s34 = sphi 0, %s32
      %s46 = sphi 0, %s48
      %s49 = sphi 0, %s46
      %s50 = sphi 0, %s49
      %s66 = sphi 0, %s50
      %s70 = sphi 0, %s70
      %s72 = sphi 0, %s70
      %s73 = sphi 0, %s72
      %s87 = sphi 0, %s73
      %s91 = sphi 0, %s91
      %s93 = sphi 0, %s91
      %s94 = sphi 0, %s93
      %s108 = sphi 0, %s94
      %s116 = sphi 0, %s118
      %s119 = sphi 0, %s116
      %s120 = sphi 0, %s119
      %s136 = sphi 0, %s120
      %s144 = sphi 0, %s146
      %s147 = sphi 0, %s144
      %s148 = sphi 0, %s147
      %s164 = sphi 0, %s148
      %s172 = sphi 0, %s174
      %s175 = sphi 0, %s172
      %s176 = sphi 0, %s175
      %s192 = sphi 0, %s176
    $region4: #{tpu_custom_call.1} parent=1 // loop_header_branch
      %25 = sbr.rel (%p23) target = $region8
    $region5: #{tpu_custom_call.1} parent=1 // loop_body
      %s27 = ssub.s32 %s22, 1
      %s28 = ssub.s32 %s22, 2
      %s35 = sadd.s32 1, %s30
      %p36 = scmp.ge.s32.totalorder %s35, 1
      %s37 = scalar_select %p36, 0, %s35
      %s38 = sadd.s32 1, %s29
      %s39 = scalar_select %p36, %s38, %s29
      %p40 = scmp.ge.s32.totalorder %s39, 2
      %s41 = scalar_select %p40, 0, %s39
      %s42 = ssub.s32 %s29, %s41
      %s43 = ssub.s32 %s30, %s37
      %s44 = sor.u32 %s42, %s43
      %p45 = scmp.eq.s32.totalorder %s44, 0
      %s47 = sadd.s32 %s46, 1
      %s48 = scalar_select %p45, %s46, %s47
      %p51 = pneg %p45
      %p52 = scmp.eq.s32.totalorder %s22, 1
      %p53 = por %p51, %p52
      %p54 = scmp.ne.s32.totalorder %s46, %s49
      %p55 = scmp.eq.s32.totalorder %s22, 0
      %p56 = por %p54, %p55
      %p57 = scmp.ne.s32.totalorder %s46, %s49
      %p58 = scmp.eq.s32.totalorder %s27, 1
      %p59 = por %p57, %p58
      %p60 = scmp.ne.s32.totalorder %s49, %s50
      %p61 = scmp.eq.s32.totalorder %s27, 0
      %p62 = por %p60, %p61
      %p63 = scmp.ne.s32.totalorder %s49, %s50
      %p64 = scmp.eq.s32.totalorder %s28, 1
      %p65 = por %p63, %p64
      %p67 = scmp.ne.s32.totalorder %s50, %s66
      %p68 = scmp.eq.s32.totalorder %s28, 0
      %p69 = por %p67, %p68
      %s71 = sadd.s32 %s70, 1
      %p74 = scmp.eq.s32.totalorder %s22, 1
      %p75 = scmp.ne.s32.totalorder %s70, %s72
      %p76 = scmp.eq.s32.totalorder %s22, 0
      %p77 = por %p75, %p76
      %p78 = scmp.ne.s32.totalorder %s70, %s72
      %p79 = scmp.eq.s32.totalorder %s27, 1
      %p80 = por %p78, %p79
      %p81 = scmp.ne.s32.totalorder %s72, %s73
      %p82 = scmp.eq.s32.totalorder %s27, 0
      %p83 = por %p81, %p82
      %p84 = scmp.ne.s32.totalorder %s72, %s73
      %p85 = scmp.eq.s32.totalorder %s28, 1
      %p86 = por %p84, %p85
      %p88 = scmp.ne.s32.totalorder %s73, %s87
      %p89 = scmp.eq.s32.totalorder %s28, 0
      %p90 = por %p88, %p89
      %s92 = sadd.s32 %s91, 1
      %p95 = scmp.eq.s32.totalorder %s22, 1
      %p96 = scmp.ne.s32.totalorder %s91, %s93
      %p97 = scmp.eq.s32.totalorder %s22, 0
      %p98 = por %p96, %p97
      %p99 = scmp.ne.s32.totalorder %s91, %s93
      %p100 = scmp.eq.s32.totalorder %s27, 1
      %p101 = por %p99, %p100
      %p102 = scmp.ne.s32.totalorder %s93, %s94
      %p103 = scmp.eq.s32.totalorder %s27, 0
      %p104 = por %p102, %p103
      %p105 = scmp.ne.s32.totalorder %s93, %s94
      %p106 = scmp.eq.s32.totalorder %s28, 1
      %p107 = por %p105, %p106
      %p109 = scmp.ne.s32.totalorder %s94, %s108
      %p110 = scmp.eq.s32.totalorder %s28, 0
      %p111 = por %p109, %p110
      %s112 = ssub.s32 %s29, %s41
      %s113 = ssub.s32 %s30, %s37
      %s114 = sor.u32 %s112, %s113
      %p115 = scmp.eq.s32.totalorder %s114, 0
      %s117 = sadd.s32 %s116, 1
      %s118 = scalar_select %p115, %s116, %s117
      %p121 = pneg %p115
      %p122 = scmp.eq.s32.totalorder %s22, 1
      %p123 = por %p121, %p122
      %p124 = scmp.ne.s32.totalorder %s116, %s119
      %p125 = scmp.eq.s32.totalorder %s22, 0
      %p126 = por %p124, %p125
      %p127 = scmp.ne.s32.totalorder %s116, %s119
      %p128 = scmp.eq.s32.totalorder %s27, 1
      %p129 = por %p127, %p128
      %p130 = scmp.ne.s32.totalorder %s119, %s120
      %p131 = scmp.eq.s32.totalorder %s27, 0
      %p132 = por %p130, %p131
      %p133 = scmp.ne.s32.totalorder %s119, %s120
      %p134 = scmp.eq.s32.totalorder %s28, 1
      %p135 = por %p133, %p134
      %p137 = scmp.ne.s32.totalorder %s120, %s136
      %p138 = scmp.eq.s32.totalorder %s28, 0
      %p139 = por %p137, %p138
      %s140 = ssub.s32 %s29, %s41
      %s141 = ssub.s32 %s30, %s37
      %s142 = sor.u32 %s140, %s141
      %p143 = scmp.eq.s32.totalorder %s142, 0
      %s145 = sadd.s32 %s144, 1
      %s146 = scalar_select %p143, %s144, %s145
      %p149 = pneg %p143
      %p150 = scmp.eq.s32.totalorder %s22, 1
      %p151 = por %p149, %p150
      %p152 = scmp.ne.s32.totalorder %s144, %s147
      %p153 = scmp.eq.s32.totalorder %s22, 0
      %p154 = por %p152, %p153
      %p155 = scmp.ne.s32.totalorder %s144, %s147
      %p156 = scmp.eq.s32.totalorder %s27, 1
      %p157 = por %p155, %p156
      %p158 = scmp.ne.s32.totalorder %s147, %s148
      %p159 = scmp.eq.s32.totalorder %s27, 0
      %p160 = por %p158, %p159
      %p161 = scmp.ne.s32.totalorder %s147, %s148
      %p162 = scmp.eq.s32.totalorder %s28, 1
      %p163 = por %p161, %p162
      %p165 = scmp.ne.s32.totalorder %s148, %s164
      %p166 = scmp.eq.s32.totalorder %s28, 0
      %p167 = por %p165, %p166
      %s168 = ssub.s32 %s29, %s41
      %s169 = ssub.s32 %s30, %s37
      %s170 = sor.u32 %s168, %s169
      %p171 = scmp.eq.s32.totalorder %s170, 0
      %s173 = sadd.s32 %s172, 1
      %s174 = scalar_select %p171, %s172, %s173
      %p177 = pneg %p171
      %p178 = scmp.eq.s32.totalorder %s22, 1
      %p179 = por %p177, %p178
      %p180 = scmp.ne.s32.totalorder %s172, %s175
      %p181 = scmp.eq.s32.totalorder %s22, 0
      %p182 = por %p180, %p181
      %p183 = scmp.ne.s32.totalorder %s172, %s175
      %p184 = scmp.eq.s32.totalorder %s27, 1
      %p185 = por %p183, %p184
      %p186 = scmp.ne.s32.totalorder %s175, %s176
      %p187 = scmp.eq.s32.totalorder %s27, 0
      %p188 = por %p186, %p187
      %p189 = scmp.ne.s32.totalorder %s175, %s176
      %p190 = scmp.eq.s32.totalorder %s28, 1
      %p191 = por %p189, %p190
      %p193 = scmp.ne.s32.totalorder %s176, %s192
      %p194 = scmp.eq.s32.totalorder %s28, 0
      %p195 = por %p193, %p194
      %p196 = scmp.le.s32.totalorder 1, %s22
      %p197 = scmp.lt.s32.totalorder %s22, 3
      %p198 = pnand %p196, %p197
      %p199 = pneg %p198
      // Predicated region
      $region9: #{tpu_custom_call.1} parent=5 // pred_check
        _
      $region10: #{tpu_custom_call.1} parent=5 // pred_check_branch
        %201 = sbr.rel (%p198) target = $region12
      $region11: #{tpu_custom_call.1} parent=5 // pred_region
        %s202 = ssub.s32 %s22, 1
        // Predicated region
        $region13: #{tpu_custom_call.1} parent=11 // pred_check
          %p203 = pneg %p83
        $region14: #{tpu_custom_call.1} parent=11 // pred_check_branch
          %205 = sbr.rel (%p203) target = $region16
        $region15: #{tpu_custom_call.1} parent=11 // pred_region
          %s207 = ssub.s32 256, 256
          %208 = vsyncadd [#allocation6], %s207
          %s209 = sshll.u32 [#allocation5], 4
          %s210 = int_to_ptr.vmem [resolvable:$true] %s209
          %215 = dma.hbm_to_vmem [thread:$0]  %s1, 256, %s210, [#allocation6], 64, 64, 4
        $region16: #{tpu_custom_call.1} parent=11 // pred_fallthru
          _
        // Predicated region
        $region17: #{tpu_custom_call.1} parent=11 // pred_check
          %p216 = pneg %p104
        $region18: #{tpu_custom_call.1} parent=11 // pred_check_branch
          %218 = sbr.rel (%p216) target = $region20
        $region19: #{tpu_custom_call.1} parent=11 // pred_region
          _
        $region20: #{tpu_custom_call.1} parent=11 // pred_fallthru
          _
      $region12: #{tpu_custom_call.1} parent=5 // pred_fallthru
        _
      %p219 = scmp.lt.s32.totalorder %s22, 2
      // Predicated region
      $region21: #{tpu_custom_call.1} parent=5 // pred_check
        %p220 = pneg %p219
      $region22: #{tpu_custom_call.1} parent=5 // pred_check_branch
        %222 = sbr.rel (%p220) target = $region24
      $region23: #{tpu_custom_call.1} parent=5 // pred_region
        // Predicated region
        $region25: #{tpu_custom_call.1} parent=23 // pred_check
          %p223 = pneg %p56
        $region26: #{tpu_custom_call.1} parent=23 // pred_check_branch
          %225 = sbr.rel (%p223) target = $region28
        $region27: #{tpu_custom_call.1} parent=23 // pred_region
          %s226 = sand.u32 %s46, 1
          %s227 = scalar_lea.sflag [#allocation3], %s226
          %s228 = sand.u32 %s46, 1
          %s229 = smul.addr %s228, 4
          %s230 = scalar_lea.vmem [#allocation2], %s229
          %s232 = ssub.s32 64, 64
          %233 = vsyncadd %s227, %s232
          %s234 = sadd.s32 %s30, %s29
          %s235 = smul.addr %s234, 64
          %s236 = scalar_lea.hbm %s0, %s235
          %s238 = sshll.u32 %s230, 4
          %s239 = int_to_ptr.vmem [resolvable:$true] %s238
          %241 = dma.hbm_to_vmem [thread:$0]  %s236, 64, %s239, %s227
        $region28: #{tpu_custom_call.1} parent=23 // pred_fallthru
          _
      $region24: #{tpu_custom_call.1} parent=5 // pred_fallthru
        _
      %p242 = scmp.le.s32.totalorder 1, %s22
      %p243 = scmp.lt.s32.totalorder %s22, 3
      %p244 = pnand %p242, %p243
      %p245 = pneg %p244
      // Predicated region
      $region29: #{tpu_custom_call.1} parent=5 // pred_check
        _
      $region30: #{tpu_custom_call.1} parent=5 // pred_check_branch
        %247 = sbr.rel (%p244) target = $region32
      $region31: #{tpu_custom_call.1} parent=5 // pred_region
        %s248 = ssub.s32 %s22, 1
        %s249 = sand.u32 %s49, 1
        %s250 = scalar_lea.sflag [#allocation3], %s249
        %s251 = sand.u32 %s49, 1
        %s252 = smul.addr %s251, 4
        %s253 = scalar_lea.vmem [#allocation2], %s252
        // Predicated region
        $region33: #{tpu_custom_call.1} parent=31 // pred_check
          %p254 = pneg %p62
        $region34: #{tpu_custom_call.1} parent=31 // pred_check_branch
          %256 = sbr.rel (%p254) target = $region36
        $region35: #{tpu_custom_call.1} parent=31 // pred_region
          %257 = dma.done %s250, 64
        $region36: #{tpu_custom_call.1} parent=31 // pred_fallthru
          _
        // Predicated region
        $region37: #{tpu_custom_call.1} parent=31 // pred_check
          %p258 = pneg %p83
        $region38: #{tpu_custom_call.1} parent=31 // pred_check_branch
          %260 = sbr.rel (%p258) target = $region40
        $region39: #{tpu_custom_call.1} parent=31 // pred_region
          %261 = dma.done [#allocation6], 256
        $region40: #{tpu_custom_call.1} parent=31 // pred_fallthru
          _
        %s262 = sand.u32 %s49, 1
        %s263 = scalar_lea.sflag [#allocation3], %s262
        %s264 = sand.u32 %s49, 1
        %s265 = smul.addr %s264, 4
        %s266 = scalar_lea.vmem [#allocation2], %s265
        %p267 = pneg %p62
        %p268 = pneg %p59
        %p269 = pneg %p83
        %p270 = pneg %p80
        %p271 = pneg %p104
        %p272 = pneg %p101
        %p273 = pneg %p132
        %p274 = pneg %p129
        %s275 = sand.u32 %s119, 1
        %s276 = scalar_lea.sflag [#allocation4], %s275
        %s277 = sand.u32 %s119, 1
        %s278 = smul.addr %s277, 4
        %s279 = scalar_lea.vmem [#allocation7], %s278
        %p280 = pneg %p160
        %p281 = pneg %p157
        %s282 = sand.u32 %s27, 1
        %s283 = scalar_lea.sflag [#allocation9], %s282
        %s284 = sand.u32 %s147, 1
        %s285 = smul.addr %s284, 4
        %s286 = scalar_lea.vmem [#allocation8], %s285
        %p287 = pneg %p188
        %p288 = pneg %p185
        %s289 = sand.u32 %s27, 1
        %s290 = scalar_lea.sflag [#allocation9], %s289
        %s291 = sand.u32 %s175, 1
        %s292 = smul.addr %s291, 4
        %s293 = scalar_lea.vmem [#allocation10], %s292
        %v295 = vld [vmem:[%s253] sm:$0xf]
        %v296 = vld [vmem:[#allocation5] sm:$0xf]
        %v297 = vld [vmem:[#allocation5 + $0x4] sm:$0xf]
        %v298 = vld [vmem:[#allocation5 + $0x8] sm:$0xf]
        %v299 = vld [vmem:[#allocation5 + $0xc] sm:$0xf]
        %v300 = vld [vmem:[%s2] sm:$0x1]
        %v302 = vlaneseq
        %v303 = vshrl.u32 %v302, 7
        %v304 = vsub.s32 0, %v303
        %v305 = vrot.slane %v300, %v304
        %v311 = vunpack.c.l.b16 %v296
        %v312 = vunpack.c.l.b16 %v297
        %v313 = vunpack.c.l.b16 %v298
        %v314 = vunpack.c.l.b16 %v299
        %v315 = vpack.c.b16 %v312, %v311
        %v316 = vpack.c.b16 %v314, %v313
        %vm319 = vcmask 261120
        %v321 = vsel %vm319, %v295, 0
        %323 = vmatprep.subr.bf16.mxu0 0
        %324 = vmatpush1.bf16.msra.mxu0 %v315
        %325 = vmatprep.subr.bf16.mxu0 0
        %326 = vmatpush1.bf16.msra.mxu0 %v316
        %327 = vmatprep.subr.bf16.mxu0 0
        %328 = vmatpush1.bf16.msra.mxu0 0
        %329 = vmatprep.subr.bf16.mxu0 0
        %330 = vmatpush1.bf16.msra.mxu0 0
        %331 = vmatprep.subr.bf16.mxu0 0
        %332 = vmatpush1.bf16.msra.mxu0 0
        %333 = vmatprep.subr.bf16.mxu0 0
        %334 = vmatpush1.bf16.msra.mxu0 0
        %335 = vmatprep.subr.bf16.mxu0 0
        %336 = vmatpush1.bf16.msra.mxu0 0
        %337 = vmatprep.subr.bf16.mxu0 0
        %338 = vmatpush1.bf16.msra.mxu0 0
        %339 = vmatprep.subr.bf16.mxu0 0
        %340 = vmatpush1.bf16.msra.mxu0 0
        %341 = vmatprep.subr.bf16.mxu0 0
        %342 = vmatpush1.bf16.msra.mxu0 0
        %343 = vmatprep.subr.bf16.mxu0 0
        %344 = vmatpush1.bf16.msra.mxu0 0
        %345 = vmatprep.subr.bf16.mxu0 0
        %346 = vmatpush1.bf16.msra.mxu0 0
        %347 = vmatprep.subr.bf16.mxu0 0
        %348 = vmatpush1.bf16.msra.mxu0 0
        %349 = vmatprep.subr.bf16.mxu0 0
        %350 = vmatpush1.bf16.msra.mxu0 0
        %351 = vmatprep.subr.bf16.mxu0 0
        %352 = vmatpush1.bf16.msra.mxu0 0
        %353 = vmatprep.subr.bf16.mxu0 0
        %354 = vmatpush1.bf16.msra.mxu0 0
        %355 = vmatprep.mubr.bf16.mxu0 0
        %356 = vmatmul.mubr.bf16.gmra.mrb[0].mxu0 %v321
        %v357 = vpop.f32.mrb[0].mxu0
        %v358 = vadd.f32 %v305, %v357
        %v359 = vpop.f32.mrb[0].mxu0
        %v360 = vpop.f32.mrb[0].mxu0
        %v361 = vpop.f32.mrb[0].mxu0
        %362 = vdwg.mxu0
        %v363 = vmul.f32 %v358, 0.35355338
        %v364 = vpack.c.bf16 %v363, %v363
        %vm365 = vcmask 257024
        %366 = vst.msk [vmem:[%s279] sm:$0xf] %vm365, %v364
        %v367 = vpack.c.bf16 %v358, %v358
        %v369 = vunpack.c.l.b16 %v367
        %v370 = vpack.c.b16 %v369, %v369
        %371 = vrot.lane.b32.xlu0 %v370, 96
        %v372 = vpop.permute.xlu0 %371
        %374 = vst.msk [vmem:[%s286] sm:$0xf] %vm365, %v372
        %375 = vrot.lane.b32.xlu0 %v370, 64
        %v376 = vpop.permute.xlu0 %375
        %378 = vst.msk [vmem:[%s293] sm:$0xf] %vm365, %v376
        %s379 = sand.u32 %s119, 1
        %s380 = scalar_lea.sflag [#allocation4], %s379
        %s381 = sand.u32 %s119, 1
        %s382 = smul.addr %s381, 4
        %s383 = scalar_lea.vmem [#allocation7], %s382
        %s384 = sand.u32 %s27, 1
        %s385 = scalar_lea.sflag [#allocation9], %s384
        %s386 = sand.u32 %s147, 1
        %s387 = smul.addr %s386, 4
        %s388 = scalar_lea.vmem [#allocation8], %s387
        %s389 = sand.u32 %s27, 1
        %s390 = scalar_lea.sflag [#allocation9], %s389
        %s391 = sand.u32 %s175, 1
        %s392 = smul.addr %s391, 4
        %s393 = scalar_lea.vmem [#allocation10], %s392
        // Predicated region
        $region41: #{tpu_custom_call.1} parent=31 // pred_check
          %p394 = pneg %p129
        $region42: #{tpu_custom_call.1} parent=31 // pred_check_branch
          %396 = sbr.rel (%p394) target = $region44
        $region43: #{tpu_custom_call.1} parent=31 // pred_region
          %s398 = ssub.s32 64, 64
          %399 = vsyncadd %s380, %s398
          %s400 = sadd.s32 %s32, %s31
          %s401 = smul.addr %s400, 64
          %s402 = scalar_lea.hbm %s3, %s401
          %s404 = sshll.u32 %s383, 4
          %s405 = int_to_ptr.vmem [resolvable:$true] %s404
          %407 = dma.vmem_to_hbm [thread:$0]  %s405, 64, %s402, %s380
        $region44: #{tpu_custom_call.1} parent=31 // pred_fallthru
          _
        // Predicated region
        $region45: #{tpu_custom_call.1} parent=31 // pred_check
          %p408 = pneg %p157
        $region46: #{tpu_custom_call.1} parent=31 // pred_check_branch
          %410 = sbr.rel (%p408) target = $region48
        $region47: #{tpu_custom_call.1} parent=31 // pred_region
          %s412 = ssub.s32 64, 64
          %413 = vsyncadd %s385, %s412
          %s414 = sadd.s32 %s32, %s31
          %s415 = smul.addr %s414, 64
          %s416 = scalar_lea.hbm %s4, %s415
          %s418 = sshll.u32 %s388, 4
          %s419 = int_to_ptr.vmem [resolvable:$true] %s418
          %421 = dma.vmem_to_hbm [thread:$0]  %s419, 64, %s416, %s385
        $region48: #{tpu_custom_call.1} parent=31 // pred_fallthru
          _
        // Predicated region
        $region49: #{tpu_custom_call.1} parent=31 // pred_check
          %p422 = pneg %p185
        $region50: #{tpu_custom_call.1} parent=31 // pred_check_branch
          %424 = sbr.rel (%p422) target = $region52
        $region51: #{tpu_custom_call.1} parent=31 // pred_region
          %s426 = ssub.s32 64, 64
          %427 = vsyncadd %s390, %s426
          %s428 = sadd.s32 %s32, %s31
          %s429 = smul.addr %s428, 64
          %s430 = scalar_lea.hbm %s5, %s429
          %s432 = sshll.u32 %s393, 4
          %s433 = int_to_ptr.vmem [resolvable:$true] %s432
          %435 = dma.vmem_to_hbm [thread:$0]  %s433, 64, %s430, %s390
        $region52: #{tpu_custom_call.1} parent=31 // pred_fallthru
          _
      $region32: #{tpu_custom_call.1} parent=5 // pred_fallthru
        _
      %p436 = scmp.le.s32.totalorder 2, %s22
      // Predicated region
      $region53: #{tpu_custom_call.1} parent=5 // pred_check
        %p437 = pneg %p436
      $region54: #{tpu_custom_call.1} parent=5 // pred_check_branch
        %439 = sbr.rel (%p437) target = $region56
      $region55: #{tpu_custom_call.1} parent=5 // pred_region
        %s440 = ssub.s32 %s22, 2
        // Predicated region
        $region57: #{tpu_custom_call.1} parent=55 // pred_check
          %p441 = pneg %p135
        $region58: #{tpu_custom_call.1} parent=55 // pred_check_branch
          %443 = sbr.rel (%p441) target = $region60
        $region59: #{tpu_custom_call.1} parent=55 // pred_region
          %s444 = sand.u32 %s120, 1
          %s445 = scalar_lea.sflag [#allocation4], %s444
          %s446 = sand.u32 %s120, 1
          %s447 = smul.addr %s446, 4
          %s448 = scalar_lea.vmem [#allocation7], %s447
          %449 = dma.done %s445, 64
        $region60: #{tpu_custom_call.1} parent=55 // pred_fallthru
          _
        // Predicated region
        $region61: #{tpu_custom_call.1} parent=55 // pred_check
          %p450 = pneg %p163
        $region62: #{tpu_custom_call.1} parent=55 // pred_check_branch
          %452 = sbr.rel (%p450) target = $region64
        $region63: #{tpu_custom_call.1} parent=55 // pred_region
          %s453 = sand.u32 %s28, 1
          %s454 = scalar_lea.sflag [#allocation9], %s453
          %s455 = sand.u32 %s148, 1
          %s456 = smul.addr %s455, 4
          %s457 = scalar_lea.vmem [#allocation8], %s456
          %458 = dma.done %s454, 64
        $region64: #{tpu_custom_call.1} parent=55 // pred_fallthru
          _
        // Predicated region
        $region65: #{tpu_custom_call.1} parent=55 // pred_check
          %p459 = pneg %p191
        $region66: #{tpu_custom_call.1} parent=55 // pred_check_branch
          %461 = sbr.rel (%p459) target = $region68
        $region67: #{tpu_custom_call.1} parent=55 // pred_region
          %s462 = sand.u32 %s28, 1
          %s463 = scalar_lea.sflag [#allocation9], %s462
          %s464 = sand.u32 %s176, 1
          %s465 = smul.addr %s464, 4
          %s466 = scalar_lea.vmem [#allocation10], %s465
          %467 = dma.done %s463, 64
        $region68: #{tpu_custom_call.1} parent=55 // pred_fallthru
          _
      $region56: #{tpu_custom_call.1} parent=5 // pred_fallthru
        _
    $region6: #{tpu_custom_call.1} parent=1 // loop_footer
      %s26 = sadd.s32 1, %s22
    $region7: #{tpu_custom_call.1} parent=1 // loop_footer_branch
      %21 = sbr.rel target = $region3
    $region8: #{tpu_custom_call.1} parent=1 // loop_exit
      _
    %468 = vsyncpa [#allocation3], 1
    %s469 = scalar_lea.sflag [#allocation3], 1
    %470 = vsyncpa %s469, 1
    %471 = vsyncpa [#allocation6], 1
    %472 = vsyncpa [#allocation4], 1
    %s473 = scalar_lea.sflag [#allocation4], 1
    %474 = vsyncpa %s473, 1
    %475 = vsyncpa [#allocation9], 1
    %s476 = scalar_lea.sflag [#allocation9], 1
    %477 = vsyncpa %s476, 1

</llo_original>
